<compile_context>
chip_gen: v5e
topology: v5e:2x2
jax: 0.10.0
libtpu: 0.0.40
codegen_flags: <defaults>
</compile_context>

<pallas_src>
import jax
import jax.numpy as jnp
from jax.experimental import pallas as pl
from jax.experimental.pallas import tpu as pltpu


_TILE_BYTES = 4 * 1024 * 1024      # per-block cap; in+out double-buffered <= ~16 MiB VMEM
_XLA_BYPASS_BYTES = 256 * 1024     # below this, launch overhead > work: let XLA fuse it


def _round_up(a, b):
    return -(-a // b) * b


def _cdiv(a, b):
    return -(-a // b)


def _num_tensorcores():
    """Best-effort TensorCores-per-chip (2 on v7x, 1 on v5e/v6e). Never raises."""
    try:
        info = pltpu.get_tpu_info()
        for attr in ("num_cores", "tensor_cores_per_chip", "core_count"):
            n = getattr(info, attr, None)
            if isinstance(n, int) and n > 0:
                return n
    except Exception:
        pass
    try:
        kind = jax.devices()[0].device_kind.lower()
        if "v7" in kind:
            return 2
    except Exception:
        pass
    return 1


def _elementwise_kernel(x_ref, o_ref):
    """((x + 2) * 3 - 1) / 4 with any int->float conversion folded in-kernel."""
    x = x_ref[...]
    if jnp.issubdtype(x_ref.dtype, jnp.floating):
        y = ((x + 2.0) * 3.0 - 1.0) * 0.25          # /4 == *0.25 exactly (power of 2)
    else:
        # Integer chain first (mirrors torch integer arithmetic), then float divide.
        y = (((x.astype(jnp.int32) + 2) * 3) - 1).astype(jnp.float32) * 0.25
    o_ref[...] = y.astype(o_ref.dtype)


def pt_module_forward(x):
    """Applies ((x + 2) * 3 - 1) / 4 elementwise via a Pallas TPU kernel."""
    orig_shape = x.shape

    # float64 is not TPU-native; demote explicitly (only matters with x64 enabled).
    if x.dtype == jnp.float64:
        x = x.astype(jnp.float32)

    if jnp.issubdtype(x.dtype, jnp.floating):
        out_dt = x.dtype
    else:
        out_dt = jnp.float32              # torch.div(int_tensor, 4) -> float result

    in_itemsize = jnp.dtype(x.dtype).itemsize
    out_itemsize = jnp.dtype(out_dt).itemsize

    total = 1
    for d in orig_shape:
        total *= int(d)
    if total == 0:
        return jnp.zeros(orig_shape, out_dt)

    # --- tiny-input bypass: XLA fuses the elementwise chain; no kernel launch.
    if total * out_itemsize < _XLA_BYPASS_BYTES:
        if jnp.issubdtype(x.dtype, jnp.floating):
            return ((x + 2.0) * 3.0 - 1.0) * 0.25
        return (((x.astype(jnp.int32) + 2) * 3) - 1).astype(out_dt) * 0.25

    # --- lane-dense 2D relayout: last dim = large multiple of 128, no 1-sublane slabs.
    x_flat = x.reshape(total)
    padded = total
    if total % 128 != 0:
        # Pad once to an (8,128)-aligned size and slice after; far cheaper than the
        # masked, single-sublane stores a (1, total) layout would produce.
        padded = _round_up(total, 1024)
        x_flat = jnp.pad(x_flat, (0, padded - total))

    C = 128
    for cand in (4096, 2048, 1024, 512, 256):
        if padded % cand == 0:
            C = cand
            break
    R = padded // C
    x2 = x_flat.reshape(R, C)            # free reinterpretation of contiguous data

    # --- row-tile selection -------------------------------------------------------
    # Sublane packing granularity (f32/i32: 8, bf16/f16: 16, i8/fp8: 32).
    sub = max(32 // in_itemsize, 32 // out_itemsize, 8)
    max_elems = max(1, _TILE_BYTES // max(in_itemsize, out_itemsize))
    cap_r = max(sub, (max(1, max_elems // C) // sub) * sub)

    num_tc = _num_tensorcores()
    if R <= cap_r:
        # Single max-size block. On single-TC chips (v5e/v6e) splitting is pure
        # per-step overhead; on v7x the array is too small to be worth sharding.
        tile_r = R
    else:
        tile_r = cap_r
        if num_tc >= 2:
            # v7x: aim for an EVEN tile count along the parallel axis so both
            # TensorCores get balanced work (odd counts leave one TC idle 1 tile).
            floor = max(sub, (cap_r // 2 // sub) * sub)
            t = cap_r
            while t >= floor:
                if _cdiv(R, t) % 2 == 0:
                    tile_r = t
                    break
                t -= sub

    grid = (_cdiv(R, tile_r),)

    # TODO(synk): if a v7x profile shows DMA-issue gaps between grid steps, add
    # pipeline_mode=pl.Buffered(3) to these BlockSpecs instead of shrinking blocks.
    out2 = pl.pallas_call(
        _elementwise_kernel,
        out_shape=jax.ShapeDtypeStruct((R, C), out_dt),
        grid_spec=pltpu.PrefetchScalarGridSpec(
            num_scalar_prefetch=0,
            grid=grid,
            in_specs=[pl.BlockSpec((tile_r, C), lambda i: (i, 0))],
            out_specs=pl.BlockSpec((tile_r, C), lambda i: (i, 0)),
        ),
        compiler_params=pltpu.CompilerParams(
            dimension_semantics=("parallel",),
            vmem_limit_bytes=32 * 1024 * 1024,
        ),
        cost_estimate=pl.CostEstimate(
            flops=4 * padded,
            transcendentals=0,
            bytes_accessed=padded * (in_itemsize + out_itemsize),
        ),
    )(x2)

    out_flat = out2.reshape(padded)
    if padded != total:
        out_flat = out_flat[:total]
    return out_flat.reshape(orig_shape)


if __name__ == "__main__":
    key = jax.random.PRNGKey(0)
    k1, k2, k3 = jax.random.split(key, 3)

    # Module-consistent small input (takes the tiny-input XLA fast path).
    x_small = jax.random.normal(k1, (2, 4, 16, 16), dtype=jnp.float32)
    y_small = pt_module_forward(x_small)

    # Larger float input: exercises the Pallas kernel on the 128-aligned path.
    x_large = jax.random.normal(k2, (8, 4, 64, 64), dtype=jnp.float32)    # 512 KiB
    y_large = pt_module_forward(x_large)

    # Non-128-divisible element count: exercises the pad + slice path.
    x_odd = jax.random.normal(k3, (131, 513), dtype=jnp.float32)          # 67203 elems
    y_odd = pt_module_forward(x_odd)

    # Integer input: int arithmetic + int->float conversion folded into the kernel.
    x_int = jax.random.randint(k1, (256, 1024), -1000, 1000, dtype=jnp.int32)
    y_int = pt_module_forward(x_int)

    jax.block_until_ready((y_small, y_large, y_odd, y_int))

    ok = True
    for xv, yv in ((x_small, y_small), (x_large, y_large), (x_odd, y_odd)):
        ref = ((xv + 2.0) * 3.0 - 1.0) / 4.0
        ok &= (yv.shape == xv.shape) and (yv.dtype == xv.dtype)
        ok &= bool(jnp.allclose(yv, ref, atol=1e-5, rtol=1e-5))

    ref_int = (((x_int + 2) * 3) - 1).astype(jnp.float32) / 4.0
    ok &= (y_int.dtype == jnp.float32) and (y_int.shape == x_int.shape)
    ok &= bool(jnp.allclose(y_int, ref_int, atol=1e-5, rtol=1e-5))

    assert ok, "mismatch vs reference"
    print("KERNEL_OK")
</pallas_src>

<mosaic_0001>
module attributes {stable_mosaic.version = 11 : i64} {
  func.func @_elementwise_kernel(%arg0: i32, %arg1: memref<32x4096xf32, #tpu.memory_space<vmem>>, %arg2: memref<32x4096xf32, #tpu.memory_space<vmem>>) attributes {dimension_semantics = [#tpu.dimension_semantics<parallel>], iteration_bounds = array<i64: 1>, scalar_prefetch = 0 : i64, scratch_operands = 0 : i64, tpu.core_type = #tpu.core_type<tc>, window_params = [{transform_indices = @transform_0, window_bounds = array<i64: 32, 4096>}, {transform_indices = @transform_1, window_bounds = array<i64: 32, 4096>}]} {
    %c0 = arith.constant 0 : index
    %c0_0 = arith.constant 0 : index
    %0 = vector.load %arg1[%c0, %c0_0] : memref<32x4096xf32, #tpu.memory_space<vmem>>, vector<32x4096xf32>
    %cst = arith.constant 2.000000e+00 : f32
    %1 = vector.broadcast %cst : f32 to vector<32x4096xf32>
    %2 = arith.addf %0, %1 : vector<32x4096xf32>
    %cst_1 = arith.constant 3.000000e+00 : f32
    %3 = vector.broadcast %cst_1 : f32 to vector<32x4096xf32>
    %4 = arith.mulf %2, %3 : vector<32x4096xf32>
    %cst_2 = arith.constant 1.000000e+00 : f32
    %5 = vector.broadcast %cst_2 : f32 to vector<32x4096xf32>
    %6 = arith.subf %4, %5 : vector<32x4096xf32>
    %cst_3 = arith.constant 2.500000e-01 : f32
    %7 = vector.broadcast %cst_3 : f32 to vector<32x4096xf32>
    %8 = arith.mulf %6, %7 : vector<32x4096xf32>
    %c0_4 = arith.constant 0 : index
    %c0_5 = arith.constant 0 : index
    %9 = vector.load %arg2[%c0_4, %c0_5] : memref<32x4096xf32, #tpu.memory_space<vmem>>, vector<32x4096xf32>
    tpu.vector_store %arg2[%c0_4, %c0_5], %8 {strides = array<i32>} : memref<32x4096xf32, #tpu.memory_space<vmem>>, vector<32x4096xf32>,
    return
  }
  func.func @transform_0(%arg0: i32) -> (i32, i32) {
    %c0_i32 = arith.constant 0 : i32
    %c0_i32_0 = arith.constant 0 : i32
    return %arg0, %c0_i32 : i32, i32
  }
  func.func @transform_1(%arg0: i32) -> (i32, i32) {
    %c0_i32 = arith.constant 0 : i32
    %c0_i32_0 = arith.constant 0 : i32
    return %arg0, %c0_i32 : i32, i32
  }
}

</mosaic_0001>

<llo_original>
// kernel: tpu_custom_call.1
$region0: #{tpu_custom_call.1}
  #allocation0 [shape = 'u32[]', space=smem, size = 0x4, offset = 0x4, fixed_abs, tag = 'smem constant byte address 0x4 - core index']
  #allocation1 [shape = 'u32[72,128]{1,0:T(1,128)}', space=vmem, size = 0x9000, scoped, tag = 'internal scratch']
  %s0 = inlined_call_operand.hbm [shape: f32[32,4096], index: 0, kind: input, shape index: {}]
  %s1 = inlined_call_operand.hbm [shape: f32[32,4096], index: 1, kind: output, shape index: {}]
  %s2 = sld [smem:[#allocation0]]
  $region18: #{tpu_custom_call.1} parent=0
    _
  %s4 = ssub.s32 1, %s2
  %s5 = scalar_select 0, %s4, %s2
  $region1: #{tpu_custom_call.1} parent=0
    #allocation2 [shape = 'u8[524288]{0}', space=vmem, size = 0x80000, scoped, tag = 'input window, operand 0, single buffered']
    #allocation3 [shape = 's32[1]{0}', space=sflag, size = 0x4, scoped, tag = 'scoped memory for tpu_custom_call.1']
    #allocation4 [shape = 's32[1]{0}', space=sflag, size = 0x4, scoped, tag = 'scoped memory for tpu_custom_call.1']
    #allocation5 [shape = 'u8[524288]{0}', space=vmem, size = 0x80000, scoped, tag = 'output window, operand 0, single buffered']
    %6 = vsyncpa [#allocation3], 0
    %7 = vsyncpa [#allocation4], 0
    // Predicated region
    $region2: #{tpu_custom_call.1} parent=1 // pred_check
      _
    $region3: #{tpu_custom_call.1} parent=1 // pred_check_branch
      %9 = sbr.rel (0) target = $region5
    $region4: #{tpu_custom_call.1} parent=1 // pred_region
      %11 = vsyncadd [#allocation3], 0
      %s12 = sshll.u32 %s0, 4
      %s13 = int_to_ptr.hbm [resolvable:$true] %s12
      %s14 = sshll.u32 [#allocation2], 4
      %s15 = int_to_ptr.vmem [resolvable:$true] %s14
      %20 = dma.hbm_to_vmem [thread:$0]  %s13, 16384, %s15, [#allocation3], 4096, 4096, 256
    $region5: #{tpu_custom_call.1} parent=1 // pred_fallthru
      _
    // Predicated region
    $region6: #{tpu_custom_call.1} parent=1 // pred_check
      _
    $region7: #{tpu_custom_call.1} parent=1 // pred_check_branch
      %22 = sbr.rel (0) target = $region9
    $region8: #{tpu_custom_call.1} parent=1 // pred_region
      %24 = dma.done [#allocation3], 16384
    $region9: #{tpu_custom_call.1} parent=1 // pred_fallthru
      _
    %v25 = vld [vmem:[#allocation2] sm:$0xff]
    %v26 = vld [vmem:[#allocation2 + $0x8] sm:$0xff]
    %v27 = vld [vmem:[#allocation2 + $0x10] sm:$0xff]
    %v28 = vld [vmem:[#allocation2 + $0x18] sm:$0xff]
    %v29 = vld [vmem:[#allocation2 + $0x20] sm:$0xff]
    %v30 = vld [vmem:[#allocation2 + $0x28] sm:$0xff]
    %v31 = vld [vmem:[#allocation2 + $0x30] sm:$0xff]
    %v32 = vld [vmem:[#allocation2 + $0x38] sm:$0xff]
    %v33 = vld [vmem:[#allocation2 + $0x40] sm:$0xff]
    %v34 = vld [vmem:[#allocation2 + $0x48] sm:$0xff]
    %v35 = vld [vmem:[#allocation2 + $0x50] sm:$0xff]
    %v36 = vld [vmem:[#allocation2 + $0x58] sm:$0xff]
    %v37 = vld [vmem:[#allocation2 + $0x60] sm:$0xff]
    %v38 = vld [vmem:[#allocation2 + $0x68] sm:$0xff]
    %v39 = vld [vmem:[#allocation2 + $0x70] sm:$0xff]
    %v40 = vld [vmem:[#allocation2 + $0x78] sm:$0xff]
    %v41 = vld [vmem:[#allocation2 + $0x80] sm:$0xff]
    %v42 = vld [vmem:[#allocation2 + $0x88] sm:$0xff]
    %v43 = vld [vmem:[#allocation2 + $0x90] sm:$0xff]
    %v44 = vld [vmem:[#allocation2 + $0x98] sm:$0xff]
    %v45 = vld [vmem:[#allocation2 + $0xa0] sm:$0xff]
    %v46 = vld [vmem:[#allocation2 + $0xa8] sm:$0xff]
    %v47 = vld [vmem:[#allocation2 + $0xb0] sm:$0xff]
    %v48 = vld [vmem:[#allocation2 + $0xb8] sm:$0xff]
    %v49 = vld [vmem:[#allocation2 + $0xc0] sm:$0xff]
    %v50 = vld [vmem:[#allocation2 + $0xc8] sm:$0xff]
    %v51 = vld [vmem:[#allocation2 + $0xd0] sm:$0xff]
    %v52 = vld [vmem:[#allocation2 + $0xd8] sm:$0xff]
    %v53 = vld [vmem:[#allocation2 + $0xe0] sm:$0xff]
    %v54 = vld [vmem:[#allocation2 + $0xe8] sm:$0xff]
    %v55 = vld [vmem:[#allocation2 + $0xf0] sm:$0xff]
    %v56 = vld [vmem:[#allocation2 + $0xf8] sm:$0xff]
    %v57 = vld [vmem:[#allocation2 + $0x100] sm:$0xff]
    %v58 = vld [vmem:[#allocation2 + $0x108] sm:$0xff]
    %v59 = vld [vmem:[#allocation2 + $0x110] sm:$0xff]
    %v60 = vld [vmem:[#allocation2 + $0x118] sm:$0xff]
    %v61 = vld [vmem:[#allocation2 + $0x120] sm:$0xff]
    %v62 = vld [vmem:[#allocation2 + $0x128] sm:$0xff]
    %v63 = vld [vmem:[#allocation2 + $0x130] sm:$0xff]
    %v64 = vld [vmem:[#allocation2 + $0x138] sm:$0xff]
    %v65 = vld [vmem:[#allocation2 + $0x140] sm:$0xff]
    %v66 = vld [vmem:[#allocation2 + $0x148] sm:$0xff]
    %v67 = vld [vmem:[#allocation2 + $0x150] sm:$0xff]
    %v68 = vld [vmem:[#allocation2 + $0x158] sm:$0xff]
    %v69 = vld [vmem:[#allocation2 + $0x160] sm:$0xff]
    %v70 = vld [vmem:[#allocation2 + $0x168] sm:$0xff]
    %v71 = vld [vmem:[#allocation2 + $0x170] sm:$0xff]
    %v72 = vld [vmem:[#allocation2 + $0x178] sm:$0xff]
    %v73 = vld [vmem:[#allocation2 + $0x180] sm:$0xff]
    %v74 = vld [vmem:[#allocation2 + $0x188] sm:$0xff]
    %v75 = vld [vmem:[#allocation2 + $0x190] sm:$0xff]
    %v76 = vld [vmem:[#allocation2 + $0x198] sm:$0xff]
    %v77 = vld [vmem:[#allocation2 + $0x1a0] sm:$0xff]
    %v78 = vld [vmem:[#allocation2 + $0x1a8] sm:$0xff]
    %v79 = vld [vmem:[#allocation2 + $0x1b0] sm:$0xff]
    %v80 = vld [vmem:[#allocation2 + $0x1b8] sm:$0xff]
    %v81 = vld [vmem:[#allocation2 + $0x1c0] sm:$0xff]
    %v82 = vld [vmem:[#allocation2 + $0x1c8] sm:$0xff]
    %v83 = vld [vmem:[#allocation2 + $0x1d0] sm:$0xff]
    %v84 = vld [vmem:[#allocation2 + $0x1d8] sm:$0xff]
    %v85 = vld [vmem:[#allocation2 + $0x1e0] sm:$0xff]
    %v86 = vld [vmem:[#allocation2 + $0x1e8] sm:$0xff]
    %v87 = vld [vmem:[#allocation2 + $0x1f0] sm:$0xff]
    %v88 = vld [vmem:[#allocation2 + $0x1f8] sm:$0xff]
    %v89 = vld [vmem:[#allocation2 + $0x200] sm:$0xff]
    %v90 = vld [vmem:[#allocation2 + $0x208] sm:$0xff]
    %v91 = vld [vmem:[#allocation2 + $0x210] sm:$0xff]
    %v92 = vld [vmem:[#allocation2 + $0x218] sm:$0xff]
    %v93 = vld [vmem:[#allocation2 + $0x220] sm:$0xff]
    %v94 = vld [vmem:[#allocation2 + $0x228] sm:$0xff]
    %v95 = vld [vmem:[#allocation2 + $0x230] sm:$0xff]
    %v96 = vld [vmem:[#allocation2 + $0x238] sm:$0xff]
    %v97 = vld [vmem:[#allocation2 + $0x240] sm:$0xff]
    %v98 = vld [vmem:[#allocation2 + $0x248] sm:$0xff]
    %v99 = vld [vmem:[#allocation2 + $0x250] sm:$0xff]
    %v100 = vld [vmem:[#allocation2 + $0x258] sm:$0xff]
    %v101 = vld [vmem:[#allocation2 + $0x260] sm:$0xff]
    %v102 = vld [vmem:[#allocation2 + $0x268] sm:$0xff]
    %v103 = vld [vmem:[#allocation2 + $0x270] sm:$0xff]
    %v104 = vld [vmem:[#allocation2 + $0x278] sm:$0xff]
    %v105 = vld [vmem:[#allocation2 + $0x280] sm:$0xff]
    %v106 = vld [vmem:[#allocation2 + $0x288] sm:$0xff]
    %v107 = vld [vmem:[#allocation2 + $0x290] sm:$0xff]
    %v108 = vld [vmem:[#allocation2 + $0x298] sm:$0xff]
    %v109 = vld [vmem:[#allocation2 + $0x2a0] sm:$0xff]
    %v110 = vld [vmem:[#allocation2 + $0x2a8] sm:$0xff]
    %v111 = vld [vmem:[#allocation2 + $0x2b0] sm:$0xff]
    %v112 = vld [vmem:[#allocation2 + $0x2b8] sm:$0xff]
    %v113 = vld [vmem:[#allocation2 + $0x2c0] sm:$0xff]
    %v114 = vld [vmem:[#allocation2 + $0x2c8] sm:$0xff]
    %v115 = vld [vmem:[#allocation2 + $0x2d0] sm:$0xff]
    %v116 = vld [vmem:[#allocation2 + $0x2d8] sm:$0xff]
    %v117 = vld [vmem:[#allocation2 + $0x2e0] sm:$0xff]
    %v118 = vld [vmem:[#allocation2 + $0x2e8] sm:$0xff]
    %v119 = vld [vmem:[#allocation2 + $0x2f0] sm:$0xff]
    %v120 = vld [vmem:[#allocation2 + $0x2f8] sm:$0xff]
    %v121 = vld [vmem:[#allocation2 + $0x300] sm:$0xff]
    %v122 = vld [vmem:[#allocation2 + $0x308] sm:$0xff]
    %v123 = vld [vmem:[#allocation2 + $0x310] sm:$0xff]
    %v124 = vld [vmem:[#allocation2 + $0x318] sm:$0xff]
    %v125 = vld [vmem:[#allocation2 + $0x320] sm:$0xff]
    %v126 = vld [vmem:[#allocation2 + $0x328] sm:$0xff]
    %v127 = vld [vmem:[#allocation2 + $0x330] sm:$0xff]
    %v128 = vld [vmem:[#allocation2 + $0x338] sm:$0xff]
    %v129 = vld [vmem:[#allocation2 + $0x340] sm:$0xff]
    %v130 = vld [vmem:[#allocation2 + $0x348] sm:$0xff]
    %v131 = vld [vmem:[#allocation2 + $0x350] sm:$0xff]
    %v132 = vld [vmem:[#allocation2 + $0x358] sm:$0xff]
    %v133 = vld [vmem:[#allocation2 + $0x360] sm:$0xff]
    %v134 = vld [vmem:[#allocation2 + $0x368] sm:$0xff]
    %v135 = vld [vmem:[#allocation2 + $0x370] sm:$0xff]
    %v136 = vld [vmem:[#allocation2 + $0x378] sm:$0xff]
    %v137 = vld [vmem:[#allocation2 + $0x380] sm:$0xff]
    %v138 = vld [vmem:[#allocation2 + $0x388] sm:$0xff]
    %v139 = vld [vmem:[#allocation2 + $0x390] sm:$0xff]
    %v140 = vld [vmem:[#allocation2 + $0x398] sm:$0xff]
    %v141 = vld [vmem:[#allocation2 + $0x3a0] sm:$0xff]
    %v142 = vld [vmem:[#allocation2 + $0x3a8] sm:$0xff]
    %v143 = vld [vmem:[#allocation2 + $0x3b0] sm:$0xff]
    %v144 = vld [vmem:[#allocation2 + $0x3b8] sm:$0xff]
    %v145 = vld [vmem:[#allocation2 + $0x3c0] sm:$0xff]
    %v146 = vld [vmem:[#allocation2 + $0x3c8] sm:$0xff]
    %v147 = vld [vmem:[#allocation2 + $0x3d0] sm:$0xff]
    %v148 = vld [vmem:[#allocation2 + $0x3d8] sm:$0xff]
    %v149 = vld [vmem:[#allocation2 + $0x3e0] sm:$0xff]
    %v150 = vld [vmem:[#allocation2 + $0x3e8] sm:$0xff]
    %v151 = vld [vmem:[#allocation2 + $0x3f0] sm:$0xff]
    %v152 = vld [vmem:[#allocation2 + $0x3f8] sm:$0xff]
    %v153 = vadd.f32 %v25, 2.0
    %v154 = vadd.f32 %v26, 2.0
    %v155 = vadd.f32 %v27, 2.0
    %v156 = vadd.f32 %v28, 2.0
    %v157 = vadd.f32 %v29, 2.0
    %v158 = vadd.f32 %v30, 2.0
    %v159 = vadd.f32 %v31, 2.0
    %v160 = vadd.f32 %v32, 2.0
    %v161 = vadd.f32 %v33, 2.0
    %v162 = vadd.f32 %v34, 2.0
    %v163 = vadd.f32 %v35, 2.0
    %v164 = vadd.f32 %v36, 2.0
    %v165 = vadd.f32 %v37, 2.0
    %v166 = vadd.f32 %v38, 2.0
    %v167 = vadd.f32 %v39, 2.0
    %v168 = vadd.f32 %v40, 2.0
    %v169 = vadd.f32 %v41, 2.0
    %v170 = vadd.f32 %v42, 2.0
    %v171 = vadd.f32 %v43, 2.0
    %v172 = vadd.f32 %v44, 2.0
    %v173 = vadd.f32 %v45, 2.0
    %v174 = vadd.f32 %v46, 2.0
    %v175 = vadd.f32 %v47, 2.0
    %v176 = vadd.f32 %v48, 2.0
    %v177 = vadd.f32 %v49, 2.0
    %v178 = vadd.f32 %v50, 2.0
    %v179 = vadd.f32 %v51, 2.0
    %v180 = vadd.f32 %v52, 2.0
    %v181 = vadd.f32 %v53, 2.0
    %v182 = vadd.f32 %v54, 2.0
    %v183 = vadd.f32 %v55, 2.0
    %v184 = vadd.f32 %v56, 2.0
    %v185 = vadd.f32 %v57, 2.0
    %v186 = vadd.f32 %v58, 2.0
    %v187 = vadd.f32 %v59, 2.0
    %v188 = vadd.f32 %v60, 2.0
    %v189 = vadd.f32 %v61, 2.0
    %v190 = vadd.f32 %v62, 2.0
    %v191 = vadd.f32 %v63, 2.0
    %v192 = vadd.f32 %v64, 2.0
    %v193 = vadd.f32 %v65, 2.0
    %v194 = vadd.f32 %v66, 2.0
    %v195 = vadd.f32 %v67, 2.0
    %v196 = vadd.f32 %v68, 2.0
    %v197 = vadd.f32 %v69, 2.0
    %v198 = vadd.f32 %v70, 2.0
    %v199 = vadd.f32 %v71, 2.0
    %v200 = vadd.f32 %v72, 2.0
    %v201 = vadd.f32 %v73, 2.0
    %v202 = vadd.f32 %v74, 2.0
    %v203 = vadd.f32 %v75, 2.0
    %v204 = vadd.f32 %v76, 2.0
    %v205 = vadd.f32 %v77, 2.0
    %v206 = vadd.f32 %v78, 2.0
    %v207 = vadd.f32 %v79, 2.0
    %v208 = vadd.f32 %v80, 2.0
    %v209 = vadd.f32 %v81, 2.0
    %v210 = vadd.f32 %v82, 2.0
    %v211 = vadd.f32 %v83, 2.0
    %v212 = vadd.f32 %v84, 2.0
    %v213 = vadd.f32 %v85, 2.0
    %v214 = vadd.f32 %v86, 2.0
    %v215 = vadd.f32 %v87, 2.0
    %v216 = vadd.f32 %v88, 2.0
    %v217 = vadd.f32 %v89, 2.0
    %v218 = vadd.f32 %v90, 2.0
    %v219 = vadd.f32 %v91, 2.0
    %v220 = vadd.f32 %v92, 2.0
    %v221 = vadd.f32 %v93, 2.0
    %v222 = vadd.f32 %v94, 2.0
    %v223 = vadd.f32 %v95, 2.0
    %v224 = vadd.f32 %v96, 2.0
    %v225 = vadd.f32 %v97, 2.0
    %v226 = vadd.f32 %v98, 2.0
    %v227 = vadd.f32 %v99, 2.0
    %v228 = vadd.f32 %v100, 2.0
    %v229 = vadd.f32 %v101, 2.0
    %v230 = vadd.f32 %v102, 2.0
    %v231 = vadd.f32 %v103, 2.0
    %v232 = vadd.f32 %v104, 2.0
    %v233 = vadd.f32 %v105, 2.0
    %v234 = vadd.f32 %v106, 2.0
    %v235 = vadd.f32 %v107, 2.0
    %v236 = vadd.f32 %v108, 2.0
    %v237 = vadd.f32 %v109, 2.0
    %v238 = vadd.f32 %v110, 2.0
    %v239 = vadd.f32 %v111, 2.0
    %v240 = vadd.f32 %v112, 2.0
    %v241 = vadd.f32 %v113, 2.0
    %v242 = vadd.f32 %v114, 2.0
    %v243 = vadd.f32 %v115, 2.0
    %v244 = vadd.f32 %v116, 2.0
    %v245 = vadd.f32 %v117, 2.0
    %v246 = vadd.f32 %v118, 2.0
    %v247 = vadd.f32 %v119, 2.0
    %v248 = vadd.f32 %v120, 2.0
    %v249 = vadd.f32 %v121, 2.0
    %v250 = vadd.f32 %v122, 2.0
    %v251 = vadd.f32 %v123, 2.0
    %v252 = vadd.f32 %v124, 2.0
    %v253 = vadd.f32 %v125, 2.0
    %v254 = vadd.f32 %v126, 2.0
    %v255 = vadd.f32 %v127, 2.0
    %v256 = vadd.f32 %v128, 2.0
    %v257 = vadd.f32 %v129, 2.0
    %v258 = vadd.f32 %v130, 2.0
    %v259 = vadd.f32 %v131, 2.0
    %v260 = vadd.f32 %v132, 2.0
    %v261 = vadd.f32 %v133, 2.0
    %v262 = vadd.f32 %v134, 2.0
    %v263 = vadd.f32 %v135, 2.0
    %v264 = vadd.f32 %v136, 2.0
    %v265 = vadd.f32 %v137, 2.0
    %v266 = vadd.f32 %v138, 2.0
    %v267 = vadd.f32 %v139, 2.0
    %v268 = vadd.f32 %v140, 2.0
    %v269 = vadd.f32 %v141, 2.0
    %v270 = vadd.f32 %v142, 2.0
    %v271 = vadd.f32 %v143, 2.0
    %v272 = vadd.f32 %v144, 2.0
    %v273 = vadd.f32 %v145, 2.0
    %v274 = vadd.f32 %v146, 2.0
    %v275 = vadd.f32 %v147, 2.0
    %v276 = vadd.f32 %v148, 2.0
    %v277 = vadd.f32 %v149, 2.0
    %v278 = vadd.f32 %v150, 2.0
    %v279 = vadd.f32 %v151, 2.0
    %v280 = vadd.f32 %v152, 2.0
    %v281 = vmul.f32 %v153, 3.0
    %v282 = vmul.f32 %v154, 3.0
    %v283 = vmul.f32 %v155, 3.0
    %v284 = vmul.f32 %v156, 3.0
    %v285 = vmul.f32 %v157, 3.0
    %v286 = vmul.f32 %v158, 3.0
    %v287 = vmul.f32 %v159, 3.0
    %v288 = vmul.f32 %v160, 3.0
    %v289 = vmul.f32 %v161, 3.0
    %v290 = vmul.f32 %v162, 3.0
    %v291 = vmul.f32 %v163, 3.0
    %v292 = vmul.f32 %v164, 3.0
    %v293 = vmul.f32 %v165, 3.0
    %v294 = vmul.f32 %v166, 3.0
    %v295 = vmul.f32 %v167, 3.0
    %v296 = vmul.f32 %v168, 3.0
    %v297 = vmul.f32 %v169, 3.0
    %v298 = vmul.f32 %v170, 3.0
    %v299 = vmul.f32 %v171, 3.0
    %v300 = vmul.f32 %v172, 3.0
    %v301 = vmul.f32 %v173, 3.0
    %v302 = vmul.f32 %v174, 3.0
    %v303 = vmul.f32 %v175, 3.0
    %v304 = vmul.f32 %v176, 3.0
    %v305 = vmul.f32 %v177, 3.0
    %v306 = vmul.f32 %v178, 3.0
    %v307 = vmul.f32 %v179, 3.0
    %v308 = vmul.f32 %v180, 3.0
    %v309 = vmul.f32 %v181, 3.0
    %v310 = vmul.f32 %v182, 3.0
    %v311 = vmul.f32 %v183, 3.0
    %v312 = vmul.f32 %v184, 3.0
    %v313 = vmul.f32 %v185, 3.0
    %v314 = vmul.f32 %v186, 3.0
    %v315 = vmul.f32 %v187, 3.0
    %v316 = vmul.f32 %v188, 3.0
    %v317 = vmul.f32 %v189, 3.0
    %v318 = vmul.f32 %v190, 3.0
    %v319 = vmul.f32 %v191, 3.0
    %v320 = vmul.f32 %v192, 3.0
    %v321 = vmul.f32 %v193, 3.0
    %v322 = vmul.f32 %v194, 3.0
    %v323 = vmul.f32 %v195, 3.0
    %v324 = vmul.f32 %v196, 3.0
    %v325 = vmul.f32 %v197, 3.0
    %v326 = vmul.f32 %v198, 3.0
    %v327 = vmul.f32 %v199, 3.0
    %v328 = vmul.f32 %v200, 3.0
    %v329 = vmul.f32 %v201, 3.0
    %v330 = vmul.f32 %v202, 3.0
    %v331 = vmul.f32 %v203, 3.0
    %v332 = vmul.f32 %v204, 3.0
    %v333 = vmul.f32 %v205, 3.0
    %v334 = vmul.f32 %v206, 3.0
    %v335 = vmul.f32 %v207, 3.0
    %v336 = vmul.f32 %v208, 3.0
    %v337 = vmul.f32 %v209, 3.0
    %v338 = vmul.f32 %v210, 3.0
    %v339 = vmul.f32 %v211, 3.0
    %v340 = vmul.f32 %v212, 3.0
    %v341 = vmul.f32 %v213, 3.0
    %v342 = vmul.f32 %v214, 3.0
    %v343 = vmul.f32 %v215, 3.0
    %v344 = vmul.f32 %v216, 3.0
    %v345 = vmul.f32 %v217, 3.0
    %v346 = vmul.f32 %v218, 3.0
    %v347 = vmul.f32 %v219, 3.0
    %v348 = vmul.f32 %v220, 3.0
    %v349 = vmul.f32 %v221, 3.0
    %v350 = vmul.f32 %v222, 3.0
    %v351 = vmul.f32 %v223, 3.0
    %v352 = vmul.f32 %v224, 3.0
    %v353 = vmul.f32 %v225, 3.0
    %v354 = vmul.f32 %v226, 3.0
    %v355 = vmul.f32 %v227, 3.0
    %v356 = vmul.f32 %v228, 3.0
    %v357 = vmul.f32 %v229, 3.0
    %v358 = vmul.f32 %v230, 3.0
    %v359 = vmul.f32 %v231, 3.0
    %v360 = vmul.f32 %v232, 3.0
    %v361 = vmul.f32 %v233, 3.0
    %v362 = vmul.f32 %v234, 3.0
    %v363 = vmul.f32 %v235, 3.0
    %v364 = vmul.f32 %v236, 3.0
    %v365 = vmul.f32 %v237, 3.0
    %v366 = vmul.f32 %v238, 3.0
    %v367 = vmul.f32 %v239, 3.0
    %v368 = vmul.f32 %v240, 3.0
    %v369 = vmul.f32 %v241, 3.0
    %v370 = vmul.f32 %v242, 3.0
    %v371 = vmul.f32 %v243, 3.0
    %v372 = vmul.f32 %v244, 3.0
    %v373 = vmul.f32 %v245, 3.0
    %v374 = vmul.f32 %v246, 3.0
    %v375 = vmul.f32 %v247, 3.0
    %v376 = vmul.f32 %v248, 3.0
    %v377 = vmul.f32 %v249, 3.0
    %v378 = vmul.f32 %v250, 3.0
    %v379 = vmul.f32 %v251, 3.0
    %v380 = vmul.f32 %v252, 3.0
    %v381 = vmul.f32 %v253, 3.0
    %v382 = vmul.f32 %v254, 3.0
    %v383 = vmul.f32 %v255, 3.0
    %v384 = vmul.f32 %v256, 3.0
    %v385 = vmul.f32 %v257, 3.0
    %v386 = vmul.f32 %v258, 3.0
    %v387 = vmul.f32 %v259, 3.0
    %v388 = vmul.f32 %v260, 3.0
    %v389 = vmul.f32 %v261, 3.0
    %v390 = vmul.f32 %v262, 3.0
    %v391 = vmul.f32 %v263, 3.0
    %v392 = vmul.f32 %v264, 3.0
    %v393 = vmul.f32 %v265, 3.0
    %v394 = vmul.f32 %v266, 3.0
    %v395 = vmul.f32 %v267, 3.0
    %v396 = vmul.f32 %v268, 3.0
    %v397 = vmul.f32 %v269, 3.0
    %v398 = vmul.f32 %v270, 3.0
    %v399 = vmul.f32 %v271, 3.0
    %v400 = vmul.f32 %v272, 3.0
    %v401 = vmul.f32 %v273, 3.0
    %v402 = vmul.f32 %v274, 3.0
    %v403 = vmul.f32 %v275, 3.0
    %v404 = vmul.f32 %v276, 3.0
    %v405 = vmul.f32 %v277, 3.0
    %v406 = vmul.f32 %v278, 3.0
    %v407 = vmul.f32 %v279, 3.0
    %v408 = vmul.f32 %v280, 3.0
    %v409 = vsub.f32 %v281, 1.0
    %v410 = vsub.f32 %v282, 1.0
    %v411 = vsub.f32 %v283, 1.0
    %v412 = vsub.f32 %v284, 1.0
    %v413 = vsub.f32 %v285, 1.0
    %v414 = vsub.f32 %v286, 1.0
    %v415 = vsub.f32 %v287, 1.0
    %v416 = vsub.f32 %v288, 1.0
    %v417 = vsub.f32 %v289, 1.0
    %v418 = vsub.f32 %v290, 1.0
    %v419 = vsub.f32 %v291, 1.0
    %v420 = vsub.f32 %v292, 1.0
    %v421 = vsub.f32 %v293, 1.0
    %v422 = vsub.f32 %v294, 1.0
    %v423 = vsub.f32 %v295, 1.0
    %v424 = vsub.f32 %v296, 1.0
    %v425 = vsub.f32 %v297, 1.0
    %v426 = vsub.f32 %v298, 1.0
    %v427 = vsub.f32 %v299, 1.0
    %v428 = vsub.f32 %v300, 1.0
    %v429 = vsub.f32 %v301, 1.0
    %v430 = vsub.f32 %v302, 1.0
    %v431 = vsub.f32 %v303, 1.0
    %v432 = vsub.f32 %v304, 1.0
    %v433 = vsub.f32 %v305, 1.0
    %v434 = vsub.f32 %v306, 1.0
    %v435 = vsub.f32 %v307, 1.0
    %v436 = vsub.f32 %v308, 1.0
    %v437 = vsub.f32 %v309, 1.0
    %v438 = vsub.f32 %v310, 1.0
    %v439 = vsub.f32 %v311, 1.0
    %v440 = vsub.f32 %v312, 1.0
    %v441 = vsub.f32 %v313, 1.0
    %v442 = vsub.f32 %v314, 1.0
    %v443 = vsub.f32 %v315, 1.0
    %v444 = vsub.f32 %v316, 1.0
    %v445 = vsub.f32 %v317, 1.0
    %v446 = vsub.f32 %v318, 1.0
    %v447 = vsub.f32 %v319, 1.0
    %v448 = vsub.f32 %v320, 1.0
    %v449 = vsub.f32 %v321, 1.0
    %v450 = vsub.f32 %v322, 1.0
    %v451 = vsub.f32 %v323, 1.0
    %v452 = vsub.f32 %v324, 1.0
    %v453 = vsub.f32 %v325, 1.0
    %v454 = vsub.f32 %v326, 1.0
    %v455 = vsub.f32 %v327, 1.0
    %v456 = vsub.f32 %v328, 1.0
    %v457 = vsub.f32 %v329, 1.0
    %v458 = vsub.f32 %v330, 1.0
    %v459 = vsub.f32 %v331, 1.0
    %v460 = vsub.f32 %v332, 1.0
    %v461 = vsub.f32 %v333, 1.0
    %v462 = vsub.f32 %v334, 1.0
    %v463 = vsub.f32 %v335, 1.0
    %v464 = vsub.f32 %v336, 1.0
    %v465 = vsub.f32 %v337, 1.0
    %v466 = vsub.f32 %v338, 1.0
    %v467 = vsub.f32 %v339, 1.0
    %v468 = vsub.f32 %v340, 1.0
    %v469 = vsub.f32 %v341, 1.0
    %v470 = vsub.f32 %v342, 1.0
    %v471 = vsub.f32 %v343, 1.0
    %v472 = vsub.f32 %v344, 1.0
    %v473 = vsub.f32 %v345, 1.0
    %v474 = vsub.f32 %v346, 1.0
    %v475 = vsub.f32 %v347, 1.0
    %v476 = vsub.f32 %v348, 1.0
    %v477 = vsub.f32 %v349, 1.0
    %v478 = vsub.f32 %v350, 1.0
    %v479 = vsub.f32 %v351, 1.0
    %v480 = vsub.f32 %v352, 1.0
    %v481 = vsub.f32 %v353, 1.0
    %v482 = vsub.f32 %v354, 1.0
    %v483 = vsub.f32 %v355, 1.0
    %v484 = vsub.f32 %v356, 1.0
    %v485 = vsub.f32 %v357, 1.0
    %v486 = vsub.f32 %v358, 1.0
    %v487 = vsub.f32 %v359, 1.0
    %v488 = vsub.f32 %v360, 1.0
    %v489 = vsub.f32 %v361, 1.0
    %v490 = vsub.f32 %v362, 1.0
    %v491 = vsub.f32 %v363, 1.0
    %v492 = vsub.f32 %v364, 1.0
    %v493 = vsub.f32 %v365, 1.0
    %v494 = vsub.f32 %v366, 1.0
    %v495 = vsub.f32 %v367, 1.0
    %v496 = vsub.f32 %v368, 1.0
    %v497 = vsub.f32 %v369, 1.0
    %v498 = vsub.f32 %v370, 1.0
    %v499 = vsub.f32 %v371, 1.0
    %v500 = vsub.f32 %v372, 1.0
    %v501 = vsub.f32 %v373, 1.0
    %v502 = vsub.f32 %v374, 1.0
    %v503 = vsub.f32 %v375, 1.0
    %v504 = vsub.f32 %v376, 1.0
    %v505 = vsub.f32 %v377, 1.0
    %v506 = vsub.f32 %v378, 1.0
    %v507 = vsub.f32 %v379, 1.0
    %v508 = vsub.f32 %v380, 1.0
    %v509 = vsub.f32 %v381, 1.0
    %v510 = vsub.f32 %v382, 1.0
    %v511 = vsub.f32 %v383, 1.0
    %v512 = vsub.f32 %v384, 1.0
    %v513 = vsub.f32 %v385, 1.0
    %v514 = vsub.f32 %v386, 1.0
    %v515 = vsub.f32 %v387, 1.0
    %v516 = vsub.f32 %v388, 1.0
    %v517 = vsub.f32 %v389, 1.0
    %v518 = vsub.f32 %v390, 1.0
    %v519 = vsub.f32 %v391, 1.0
    %v520 = vsub.f32 %v392, 1.0
    %v521 = vsub.f32 %v393, 1.0
    %v522 = vsub.f32 %v394, 1.0
    %v523 = vsub.f32 %v395, 1.0
    %v524 = vsub.f32 %v396, 1.0
    %v525 = vsub.f32 %v397, 1.0
    %v526 = vsub.f32 %v398, 1.0
    %v527 = vsub.f32 %v399, 1.0
    %v528 = vsub.f32 %v400, 1.0
    %v529 = vsub.f32 %v401, 1.0
    %v530 = vsub.f32 %v402, 1.0
    %v531 = vsub.f32 %v403, 1.0
    %v532 = vsub.f32 %v404, 1.0
    %v533 = vsub.f32 %v405, 1.0
    %v534 = vsub.f32 %v406, 1.0
    %v535 = vsub.f32 %v407, 1.0
    %v536 = vsub.f32 %v408, 1.0
    %v537 = vmul.f32 %v409, 0.25
    %v538 = vmul.f32 %v410, 0.25
    %v539 = vmul.f32 %v411, 0.25
    %v540 = vmul.f32 %v412, 0.25
    %v541 = vmul.f32 %v413, 0.25
    %v542 = vmul.f32 %v414, 0.25
    %v543 = vmul.f32 %v415, 0.25
    %v544 = vmul.f32 %v416, 0.25
    %v545 = vmul.f32 %v417, 0.25
    %v546 = vmul.f32 %v418, 0.25
    %v547 = vmul.f32 %v419, 0.25
    %v548 = vmul.f32 %v420, 0.25
    %v549 = vmul.f32 %v421, 0.25
    %v550 = vmul.f32 %v422, 0.25
    %v551 = vmul.f32 %v423, 0.25
    %v552 = vmul.f32 %v424, 0.25
    %v553 = vmul.f32 %v425, 0.25
    %v554 = vmul.f32 %v426, 0.25
    %v555 = vmul.f32 %v427, 0.25
    %v556 = vmul.f32 %v428, 0.25
    %v557 = vmul.f32 %v429, 0.25
    %v558 = vmul.f32 %v430, 0.25
    %v559 = vmul.f32 %v431, 0.25
    %v560 = vmul.f32 %v432, 0.25
    %v561 = vmul.f32 %v433, 0.25
    %v562 = vmul.f32 %v434, 0.25
    %v563 = vmul.f32 %v435, 0.25
    %v564 = vmul.f32 %v436, 0.25
    %v565 = vmul.f32 %v437, 0.25
    %v566 = vmul.f32 %v438, 0.25
    %v567 = vmul.f32 %v439, 0.25
    %v568 = vmul.f32 %v440, 0.25
    %v569 = vmul.f32 %v441, 0.25
    %v570 = vmul.f32 %v442, 0.25
    %v571 = vmul.f32 %v443, 0.25
    %v572 = vmul.f32 %v444, 0.25
    %v573 = vmul.f32 %v445, 0.25
    %v574 = vmul.f32 %v446, 0.25
    %v575 = vmul.f32 %v447, 0.25
    %v576 = vmul.f32 %v448, 0.25
    %v577 = vmul.f32 %v449, 0.25
    %v578 = vmul.f32 %v450, 0.25
    %v579 = vmul.f32 %v451, 0.25
    %v580 = vmul.f32 %v452, 0.25
    %v581 = vmul.f32 %v453, 0.25
    %v582 = vmul.f32 %v454, 0.25
    %v583 = vmul.f32 %v455, 0.25
    %v584 = vmul.f32 %v456, 0.25
    %v585 = vmul.f32 %v457, 0.25
    %v586 = vmul.f32 %v458, 0.25
    %v587 = vmul.f32 %v459, 0.25
    %v588 = vmul.f32 %v460, 0.25
    %v589 = vmul.f32 %v461, 0.25
    %v590 = vmul.f32 %v462, 0.25
    %v591 = vmul.f32 %v463, 0.25
    %v592 = vmul.f32 %v464, 0.25
    %v593 = vmul.f32 %v465, 0.25
    %v594 = vmul.f32 %v466, 0.25
    %v595 = vmul.f32 %v467, 0.25
    %v596 = vmul.f32 %v468, 0.25
    %v597 = vmul.f32 %v469, 0.25
    %v598 = vmul.f32 %v470, 0.25
    %v599 = vmul.f32 %v471, 0.25
    %v600 = vmul.f32 %v472, 0.25
    %v601 = vmul.f32 %v473, 0.25
    %v602 = vmul.f32 %v474, 0.25
    %v603 = vmul.f32 %v475, 0.25
    %v604 = vmul.f32 %v476, 0.25
    %v605 = vmul.f32 %v477, 0.25
    %v606 = vmul.f32 %v478, 0.25
    %v607 = vmul.f32 %v479, 0.25
    %v608 = vmul.f32 %v480, 0.25
    %v609 = vmul.f32 %v481, 0.25
    %v610 = vmul.f32 %v482, 0.25
    %v611 = vmul.f32 %v483, 0.25
    %v612 = vmul.f32 %v484, 0.25
    %v613 = vmul.f32 %v485, 0.25
    %v614 = vmul.f32 %v486, 0.25
    %v615 = vmul.f32 %v487, 0.25
    %v616 = vmul.f32 %v488, 0.25
    %v617 = vmul.f32 %v489, 0.25
    %v618 = vmul.f32 %v490, 0.25
    %v619 = vmul.f32 %v491, 0.25
    %v620 = vmul.f32 %v492, 0.25
    %v621 = vmul.f32 %v493, 0.25
    %v622 = vmul.f32 %v494, 0.25
    %v623 = vmul.f32 %v495, 0.25
    %v624 = vmul.f32 %v496, 0.25
    %v625 = vmul.f32 %v497, 0.25
    %v626 = vmul.f32 %v498, 0.25
    %v627 = vmul.f32 %v499, 0.25
    %v628 = vmul.f32 %v500, 0.25
    %v629 = vmul.f32 %v501, 0.25
    %v630 = vmul.f32 %v502, 0.25
    %v631 = vmul.f32 %v503, 0.25
    %v632 = vmul.f32 %v504, 0.25
    %v633 = vmul.f32 %v505, 0.25
    %v634 = vmul.f32 %v506, 0.25
    %v635 = vmul.f32 %v507, 0.25
    %v636 = vmul.f32 %v508, 0.25
    %v637 = vmul.f32 %v509, 0.25
    %v638 = vmul.f32 %v510, 0.25
    %v639 = vmul.f32 %v511, 0.25
    %v640 = vmul.f32 %v512, 0.25
    %v641 = vmul.f32 %v513, 0.25
    %v642 = vmul.f32 %v514, 0.25
    %v643 = vmul.f32 %v515, 0.25
    %v644 = vmul.f32 %v516, 0.25
    %v645 = vmul.f32 %v517, 0.25
    %v646 = vmul.f32 %v518, 0.25
    %v647 = vmul.f32 %v519, 0.25
    %v648 = vmul.f32 %v520, 0.25
    %v649 = vmul.f32 %v521, 0.25
    %v650 = vmul.f32 %v522, 0.25
    %v651 = vmul.f32 %v523, 0.25
    %v652 = vmul.f32 %v524, 0.25
    %v653 = vmul.f32 %v525, 0.25
    %v654 = vmul.f32 %v526, 0.25
    %v655 = vmul.f32 %v527, 0.25
    %v656 = vmul.f32 %v528, 0.25
    %v657 = vmul.f32 %v529, 0.25
    %v658 = vmul.f32 %v530, 0.25
    %v659 = vmul.f32 %v531, 0.25
    %v660 = vmul.f32 %v532, 0.25
    %v661 = vmul.f32 %v533, 0.25
    %v662 = vmul.f32 %v534, 0.25
    %v663 = vmul.f32 %v535, 0.25
    %v664 = vmul.f32 %v536, 0.25
    %665 = vst [vmem:[#allocation5] sm:$0xff] %v537
    %666 = vst [vmem:[#allocation5 + $0x8] sm:$0xff] %v538
    %667 = vst [vmem:[#allocation5 + $0x10] sm:$0xff] %v539
    %668 = vst [vmem:[#allocation5 + $0x18] sm:$0xff] %v540
    %669 = vst [vmem:[#allocation5 + $0x20] sm:$0xff] %v541
    %670 = vst [vmem:[#allocation5 + $0x28] sm:$0xff] %v542
    %671 = vst [vmem:[#allocation5 + $0x30] sm:$0xff] %v543
    %672 = vst [vmem:[#allocation5 + $0x38] sm:$0xff] %v544
    %673 = vst [vmem:[#allocation5 + $0x40] sm:$0xff] %v545
    %674 = vst [vmem:[#allocation5 + $0x48] sm:$0xff] %v546
    %675 = vst [vmem:[#allocation5 + $0x50] sm:$0xff] %v547
    %676 = vst [vmem:[#allocation5 + $0x58] sm:$0xff] %v548
    %677 = vst [vmem:[#allocation5 + $0x60] sm:$0xff] %v549
    %678 = vst [vmem:[#allocation5 + $0x68] sm:$0xff] %v550
    %679 = vst [vmem:[#allocation5 + $0x70] sm:$0xff] %v551
    %680 = vst [vmem:[#allocation5 + $0x78] sm:$0xff] %v552
    %681 = vst [vmem:[#allocation5 + $0x80] sm:$0xff] %v553
    %682 = vst [vmem:[#allocation5 + $0x88] sm:$0xff] %v554
    %683 = vst [vmem:[#allocation5 + $0x90] sm:$0xff] %v555
    %684 = vst [vmem:[#allocation5 + $0x98] sm:$0xff] %v556
    %685 = vst [vmem:[#allocation5 + $0xa0] sm:$0xff] %v557
    %686 = vst [vmem:[#allocation5 + $0xa8] sm:$0xff] %v558
    %687 = vst [vmem:[#allocation5 + $0xb0] sm:$0xff] %v559
    %688 = vst [vmem:[#allocation5 + $0xb8] sm:$0xff] %v560
    %689 = vst [vmem:[#allocation5 + $0xc0] sm:$0xff] %v561
    %690 = vst [vmem:[#allocation5 + $0xc8] sm:$0xff] %v562
    %691 = vst [vmem:[#allocation5 + $0xd0] sm:$0xff] %v563
    %692 = vst [vmem:[#allocation5 + $0xd8] sm:$0xff] %v564
    %693 = vst [vmem:[#allocation5 + $0xe0] sm:$0xff] %v565
    %694 = vst [vmem:[#allocation5 + $0xe8] sm:$0xff] %v566
    %695 = vst [vmem:[#allocation5 + $0xf0] sm:$0xff] %v567
    %696 = vst [vmem:[#allocation5 + $0xf8] sm:$0xff] %v568
    %697 = vst [vmem:[#allocation5 + $0x100] sm:$0xff] %v569
    %698 = vst [vmem:[#allocation5 + $0x108] sm:$0xff] %v570
    %699 = vst [vmem:[#allocation5 + $0x110] sm:$0xff] %v571
    %700 = vst [vmem:[#allocation5 + $0x118] sm:$0xff] %v572
    %701 = vst [vmem:[#allocation5 + $0x120] sm:$0xff] %v573
    %702 = vst [vmem:[#allocation5 + $0x128] sm:$0xff] %v574
    %703 = vst [vmem:[#allocation5 + $0x130] sm:$0xff] %v575
    %704 = vst [vmem:[#allocation5 + $0x138] sm:$0xff] %v576
    %705 = vst [vmem:[#allocation5 + $0x140] sm:$0xff] %v577
    %706 = vst [vmem:[#allocation5 + $0x148] sm:$0xff] %v578
    %707 = vst [vmem:[#allocation5 + $0x150] sm:$0xff] %v579
    %708 = vst [vmem:[#allocation5 + $0x158] sm:$0xff] %v580
    %709 = vst [vmem:[#allocation5 + $0x160] sm:$0xff] %v581
    %710 = vst [vmem:[#allocation5 + $0x168] sm:$0xff] %v582
    %711 = vst [vmem:[#allocation5 + $0x170] sm:$0xff] %v583
    %712 = vst [vmem:[#allocation5 + $0x178] sm:$0xff] %v584
    %713 = vst [vmem:[#allocation5 + $0x180] sm:$0xff] %v585
    %714 = vst [vmem:[#allocation5 + $0x188] sm:$0xff] %v586
    %715 = vst [vmem:[#allocation5 + $0x190] sm:$0xff] %v587
    %716 = vst [vmem:[#allocation5 + $0x198] sm:$0xff] %v588
    %717 = vst [vmem:[#allocation5 + $0x1a0] sm:$0xff] %v589
    %718 = vst [vmem:[#allocation5 + $0x1a8] sm:$0xff] %v590
    %719 = vst [vmem:[#allocation5 + $0x1b0] sm:$0xff] %v591
    %720 = vst [vmem:[#allocation5 + $0x1b8] sm:$0xff] %v592
    %721 = vst [vmem:[#allocation5 + $0x1c0] sm:$0xff] %v593
    %722 = vst [vmem:[#allocation5 + $0x1c8] sm:$0xff] %v594
    %723 = vst [vmem:[#allocation5 + $0x1d0] sm:$0xff] %v595
    %724 = vst [vmem:[#allocation5 + $0x1d8] sm:$0xff] %v596
    %725 = vst [vmem:[#allocation5 + $0x1e0] sm:$0xff] %v597
    %726 = vst [vmem:[#allocation5 + $0x1e8] sm:$0xff] %v598
    %727 = vst [vmem:[#allocation5 + $0x1f0] sm:$0xff] %v599
    %728 = vst [vmem:[#allocation5 + $0x1f8] sm:$0xff] %v600
    %729 = vst [vmem:[#allocation5 + $0x200] sm:$0xff] %v601
    %730 = vst [vmem:[#allocation5 + $0x208] sm:$0xff] %v602
    %731 = vst [vmem:[#allocation5 + $0x210] sm:$0xff] %v603
    %732 = vst [vmem:[#allocation5 + $0x218] sm:$0xff] %v604
    %733 = vst [vmem:[#allocation5 + $0x220] sm:$0xff] %v605
    %734 = vst [vmem:[#allocation5 + $0x228] sm:$0xff] %v606
    %735 = vst [vmem:[#allocation5 + $0x230] sm:$0xff] %v607
    %736 = vst [vmem:[#allocation5 + $0x238] sm:$0xff] %v608
    %737 = vst [vmem:[#allocation5 + $0x240] sm:$0xff] %v609
    %738 = vst [vmem:[#allocation5 + $0x248] sm:$0xff] %v610
    %739 = vst [vmem:[#allocation5 + $0x250] sm:$0xff] %v611
    %740 = vst [vmem:[#allocation5 + $0x258] sm:$0xff] %v612
    %741 = vst [vmem:[#allocation5 + $0x260] sm:$0xff] %v613
    %742 = vst [vmem:[#allocation5 + $0x268] sm:$0xff] %v614
    %743 = vst [vmem:[#allocation5 + $0x270] sm:$0xff] %v615
    %744 = vst [vmem:[#allocation5 + $0x278] sm:$0xff] %v616
    %745 = vst [vmem:[#allocation5 + $0x280] sm:$0xff] %v617
    %746 = vst [vmem:[#allocation5 + $0x288] sm:$0xff] %v618
    %747 = vst [vmem:[#allocation5 + $0x290] sm:$0xff] %v619
    %748 = vst [vmem:[#allocation5 + $0x298] sm:$0xff] %v620
    %749 = vst [vmem:[#allocation5 + $0x2a0] sm:$0xff] %v621
    %750 = vst [vmem:[#allocation5 + $0x2a8] sm:$0xff] %v622
    %751 = vst [vmem:[#allocation5 + $0x2b0] sm:$0xff] %v623
    %752 = vst [vmem:[#allocation5 + $0x2b8] sm:$0xff] %v624
    %753 = vst [vmem:[#allocation5 + $0x2c0] sm:$0xff] %v625
    %754 = vst [vmem:[#allocation5 + $0x2c8] sm:$0xff] %v626
    %755 = vst [vmem:[#allocation5 + $0x2d0] sm:$0xff] %v627
    %756 = vst [vmem:[#allocation5 + $0x2d8] sm:$0xff] %v628
    %757 = vst [vmem:[#allocation5 + $0x2e0] sm:$0xff] %v629
    %758 = vst [vmem:[#allocation5 + $0x2e8] sm:$0xff] %v630
    %759 = vst [vmem:[#allocation5 + $0x2f0] sm:$0xff] %v631
    %760 = vst [vmem:[#allocation5 + $0x2f8] sm:$0xff] %v632
    %761 = vst [vmem:[#allocation5 + $0x300] sm:$0xff] %v633
    %762 = vst [vmem:[#allocation5 + $0x308] sm:$0xff] %v634
    %763 = vst [vmem:[#allocation5 + $0x310] sm:$0xff] %v635
    %764 = vst [vmem:[#allocation5 + $0x318] sm:$0xff] %v636
    %765 = vst [vmem:[#allocation5 + $0x320] sm:$0xff] %v637
    %766 = vst [vmem:[#allocation5 + $0x328] sm:$0xff] %v638
    %767 = vst [vmem:[#allocation5 + $0x330] sm:$0xff] %v639
    %768 = vst [vmem:[#allocation5 + $0x338] sm:$0xff] %v640
    %769 = vst [vmem:[#allocation5 + $0x340] sm:$0xff] %v641
    %770 = vst [vmem:[#allocation5 + $0x348] sm:$0xff] %v642
    %771 = vst [vmem:[#allocation5 + $0x350] sm:$0xff] %v643
    %772 = vst [vmem:[#allocation5 + $0x358] sm:$0xff] %v644
    %773 = vst [vmem:[#allocation5 + $0x360] sm:$0xff] %v645
    %774 = vst [vmem:[#allocation5 + $0x368] sm:$0xff] %v646
    %775 = vst [vmem:[#allocation5 + $0x370] sm:$0xff] %v647
    %776 = vst [vmem:[#allocation5 + $0x378] sm:$0xff] %v648
    %777 = vst [vmem:[#allocation5 + $0x380] sm:$0xff] %v649
    %778 = vst [vmem:[#allocation5 + $0x388] sm:$0xff] %v650
    %779 = vst [vmem:[#allocation5 + $0x390] sm:$0xff] %v651
    %780 = vst [vmem:[#allocation5 + $0x398] sm:$0xff] %v652
    %781 = vst [vmem:[#allocation5 + $0x3a0] sm:$0xff] %v653
    %782 = vst [vmem:[#allocation5 + $0x3a8] sm:$0xff] %v654
    %783 = vst [vmem:[#allocation5 + $0x3b0] sm:$0xff] %v655
    %784 = vst [vmem:[#allocation5 + $0x3b8] sm:$0xff] %v656
    %785 = vst [vmem:[#allocation5 + $0x3c0] sm:$0xff] %v657
    %786 = vst [vmem:[#allocation5 + $0x3c8] sm:$0xff] %v658
    %787 = vst [vmem:[#allocation5 + $0x3d0] sm:$0xff] %v659
    %788 = vst [vmem:[#allocation5 + $0x3d8] sm:$0xff] %v660
    %789 = vst [vmem:[#allocation5 + $0x3e0] sm:$0xff] %v661
    %790 = vst [vmem:[#allocation5 + $0x3e8] sm:$0xff] %v662
    %791 = vst [vmem:[#allocation5 + $0x3f0] sm:$0xff] %v663
    %792 = vst [vmem:[#allocation5 + $0x3f8] sm:$0xff] %v664
    // Predicated region
    $region10: #{tpu_custom_call.1} parent=1 // pred_check
      _
    $region11: #{tpu_custom_call.1} parent=1 // pred_check_branch
      %794 = sbr.rel (0) target = $region13
    $region12: #{tpu_custom_call.1} parent=1 // pred_region
      %796 = vsyncadd [#allocation4], 0
      %s797 = sshll.u32 [#allocation5], 4
      %s798 = int_to_ptr.vmem [resolvable:$true] %s797
      %s799 = sshll.u32 %s1, 4
      %s800 = int_to_ptr.hbm [resolvable:$true] %s799
      %805 = dma.vmem_to_hbm [thread:$0]  %s798, 16384, %s800, [#allocation4], 4096, 4096, 256
    $region13: #{tpu_custom_call.1} parent=1 // pred_fallthru
      _
    // Predicated region
    $region14: #{tpu_custom_call.1} parent=1 // pred_check
      _
    $region15: #{tpu_custom_call.1} parent=1 // pred_check_branch
      %807 = sbr.rel (0) target = $region17
    $region16: #{tpu_custom_call.1} parent=1 // pred_region
      %809 = dma.done [#allocation4], 16384
    $region17: #{tpu_custom_call.1} parent=1 // pred_fallthru
      _
    %810 = vsyncpa [#allocation3], 1
    %811 = vsyncpa [#allocation4], 1

</llo_original>
